<compile_context>
chip_gen: v7x
topology: tpu7x:2x2x1
jax: 0.10.0
libtpu: 0.0.40
codegen_flags: <defaults>
</compile_context>

<pallas_src>
import functools

import jax
import jax.numpy as jnp
from jax.experimental import pallas as pl
from jax.experimental.pallas import tpu as pltpu


EPS = 1e-12


def _normalize_kernel(x_ref, gamma_ref, beta_ref, o_ref):
    # x_ref: (tr, K2) tile -- one filter per sublane row, filter taps on lanes.
    x = x_ref[...].astype(jnp.float32)
    k2 = x.shape[1]
    # Bessel's correction (torch .std default, divisor N-1). Guard k2 == 1 at
    # trace time so we don't divide by zero in Python.
    # TODO(synk): k=1 filters give NaN std in torch (0/0); here they fall back
    # to divisor 1 (output collapses to beta) -- a silent divergence if exact
    # parity with torch's NaN propagation is required.
    bessel = k2 - 1 if k2 > 1 else 1

    # Per-row (per-filter) statistics over the lane (reduction) axis.
    mean = jnp.sum(x, axis=-1, keepdims=True) * (1.0 / k2)           # (tr, 1)
    diff = x - mean
    var = jnp.sum(diff * diff, axis=-1, keepdims=True) * (1.0 / bessel)
    std = jnp.sqrt(var)                                              # (tr, 1)

    # One exact divide per filter (gamma folded into the scale); body is a
    # broadcast mul + add. Rounding order differs slightly from torch's
    # gamma*(x-mean)/(std+eps) but is well within 1e-5.
    scale = gamma_ref[...] / (std + EPS)                             # (tr, 1)
    o_ref[...] = (diff * scale + beta_ref[...]).astype(o_ref.dtype)


def make_affine_columns(gamma, beta, nr_group_elems, nr_basis):
    """Build the per-filter (R, 1) gamma/beta columns ONCE at setup.

    gamma/beta come from get_normalization_schedule() and are shaped (nr_basis,)
    or (1,). If they are learnable parameters, rebuild these columns after each
    optimizer step (4 tiny ops) -- still outside the per-call hot path.
    """
    S, D = nr_group_elems, nr_basis
    R = S * D
    g = jnp.asarray(gamma, jnp.float32).reshape(1, -1)
    b = jnp.asarray(beta, jnp.float32).reshape(1, -1)
    gamma_col = jnp.broadcast_to(g, (S, D)).reshape(R, 1)
    beta_col = jnp.broadcast_to(b, (S, D)).reshape(R, 1)
    return gamma_col, beta_col


@jax.jit
def normalize_basis_pallas(unnormalized_basis, gamma_col, beta_col):
    """unnormalized_basis: (S, D, k, k) f32; gamma_col/beta_col: (S*D, 1) f32."""
    S, D, k, _ = unnormalized_basis.shape
    R = S * D
    K2 = k * k

    # Natural contiguous layout: (R, K2). Pure reshape, no transpose.
    x = unnormalized_basis.reshape(R, K2)
    out_shape = jax.ShapeDtypeStruct((R, K2), unnormalized_basis.dtype)

    # Whole-slab footprint (x + out) in f32.
    slab_bytes = R * K2 * 4 * 2

    if slab_bytes <= (8 << 20):
        # Single-block path (the module's real shapes: ~13 KB): no grid, no
        # pipeline, whole arrays resident in VMEM. Fixed per-call overhead only.
        out = pl.pallas_call(
            _normalize_kernel,
            out_shape=out_shape,
            in_specs=[
                pl.BlockSpec(memory_space=pltpu.MemorySpace.VMEM),
                pl.BlockSpec(memory_space=pltpu.MemorySpace.VMEM),
                pl.BlockSpec(memory_space=pltpu.MemorySpace.VMEM),
            ],
            out_specs=pl.BlockSpec(memory_space=pltpu.MemorySpace.VMEM),
        )(x, gamma_col, beta_col)
    else:
        # Large-R fallback: tile the filter (sublane) axis. Target ~4 MiB of
        # HBM traffic per grid step so the ~0.35 us step overhead is hidden
        # even at v7x's ~3.2 TB/s HBM; per-block VMEM is tr*K2*4 * 2 streams
        # * 2 buffers (a few MiB), far under the 64 MiB v7x budget.
        target_bytes = 4 << 20
        tr = max(8, min(R, (target_bytes // (K2 * 4 * 2)) // 8 * 8))
        grid = (pl.cdiv(R, tr),)
        out = pl.pallas_call(
            _normalize_kernel,
            out_shape=out_shape,
            grid_spec=pltpu.PrefetchScalarGridSpec(
                num_scalar_prefetch=0,
                grid=grid,
                in_specs=[
                    pl.BlockSpec((tr, K2), lambda i: (i, 0)),
                    pl.BlockSpec((tr, 1), lambda i: (i, 0)),
                    pl.BlockSpec((tr, 1), lambda i: (i, 0)),
                ],
                out_specs=pl.BlockSpec((tr, K2), lambda i: (i, 0)),
            ),
            compiler_params=pltpu.CompilerParams(
                # Rows are independent: shard the R grid across v7x's 2 TCs.
                dimension_semantics=("parallel",)),
        )(x, gamma_col, beta_col)

    return out.reshape(S, D, k, k)


def normalize_basis_ref(x, gamma, beta):
    """Pure-JAX reference mirroring the PyTorch else-branch of normalize_basis."""
    S, D, k, _ = x.shape
    flat = x.reshape(S, D, -1)
    mean = flat.mean(-1)
    std = jnp.sqrt(((flat - mean[..., None]) ** 2).sum(-1) / (k * k - 1))
    g = gamma.reshape(-1)[:, None, None]
    b = beta.reshape(-1)[:, None, None]
    return g * (x - mean[:, :, None, None]) / (std[:, :, None, None] + EPS) + b


if __name__ == "__main__":
    # Small, module-consistent shapes:
    #   nr_group_elems S = 8, nr_basis D = 16, basis_sz k = 5
    S, D, k = 8, 16, 5

    key = jax.random.PRNGKey(0)
    k_basis, _ = jax.random.split(key)

    # reset_parameters(): normal(0, std) with std = 1/45
    std_init = 1.0 / 45.0
    unnormalized_basis = std_init * jax.random.normal(
        k_basis, (S, D, k, k), dtype=jnp.float32)

    # get_normalization_schedule() with normalize = (45.0, True, True, True, True):
    #   gamma = [1/45] * nr_basis, beta = [0.0] * nr_basis
    gamma = jnp.full((D,), 1.0 / 45.0, dtype=jnp.float32)
    beta = jnp.zeros((D,), dtype=jnp.float32)

    # Built once at module setup, not per call.
    gamma_col, beta_col = make_affine_columns(gamma, beta, S, D)

    out = normalize_basis_pallas(unnormalized_basis, gamma_col, beta_col)
    out = jax.block_until_ready(out)

    ref = normalize_basis_ref(unnormalized_basis, gamma, beta)
    assert out.shape == (S, D, k, k)
    assert jnp.allclose(out, ref, atol=1e-5, rtol=1e-5), "mismatch vs reference"

    # TODO(synk): Basis.forward() raises NotImplementedError in the PyTorch
    # module; only normalize_basis() (the compute path) is implemented here.
    # At these tiny shapes the ideal deployment fuses this into the consumer
    # conv (or leaves it to XLA fusion) rather than a standalone launch.
    print("KERNEL_OK")
</pallas_src>

<mosaic_0001>
module attributes {stable_mosaic.version = 11 : i64} {
  func.func @_normalize_kernel(%arg0: memref<128x25xf32, #tpu.memory_space<vmem>>, %arg1: memref<128x1xf32, #tpu.memory_space<vmem>>, %arg2: memref<128x1xf32, #tpu.memory_space<vmem>>, %arg3: memref<128x25xf32, #tpu.memory_space<vmem>>) attributes {dimension_semantics = [], scalar_prefetch = 0 : i64, scratch_operands = 0 : i64, tpu.core_type = #tpu.core_type<tc>} {
    %c0 = arith.constant 0 : index
    %c0_0 = arith.constant 0 : index
    %0 = vector.load %arg0[%c0, %c0_0] : memref<128x25xf32, #tpu.memory_space<vmem>>, vector<128x25xf32>
    %cst = arith.constant dense<0.000000e+00> : vector<128xf32>
    %1 = vector.multi_reduction <add>, %0, %cst [1] : vector<128x25xf32> to vector<128xf32>
    %2 = vector.shape_cast %1 : vector<128xf32> to vector<128x1xf32>
    %cst_1 = arith.constant 4.000000e-02 : f32
    %3 = vector.broadcast %cst_1 : f32 to vector<128x1xf32>
    %4 = arith.mulf %2, %3 : vector<128x1xf32>
    %5 = vector.broadcast %4 : vector<128x1xf32> to vector<128x25xf32>
    %6 = arith.subf %0, %5 : vector<128x25xf32>
    %7 = arith.mulf %6, %6 : vector<128x25xf32>
    %cst_2 = arith.constant dense<0.000000e+00> : vector<128xf32>
    %8 = vector.multi_reduction <add>, %7, %cst_2 [1] : vector<128x25xf32> to vector<128xf32>
    %9 = vector.shape_cast %8 : vector<128xf32> to vector<128x1xf32>
    %cst_3 = arith.constant 0.0416666679 : f32
    %10 = vector.broadcast %cst_3 : f32 to vector<128x1xf32>
    %11 = arith.mulf %9, %10 : vector<128x1xf32>
    %12 = math.sqrt %11 : vector<128x1xf32>
    %c0_4 = arith.constant 0 : index
    %c0_5 = arith.constant 0 : index
    %13 = vector.load %arg1[%c0_4, %c0_5] : memref<128x1xf32, #tpu.memory_space<vmem>>, vector<128x1xf32>
    %cst_6 = arith.constant 9.99999996E-13 : f32
    %14 = vector.broadcast %cst_6 : f32 to vector<128x1xf32>
    %15 = arith.addf %12, %14 : vector<128x1xf32>
    %16 = arith.divf %13, %15 : vector<128x1xf32>
    %17 = vector.broadcast %16 : vector<128x1xf32> to vector<128x25xf32>
    %18 = arith.mulf %6, %17 : vector<128x25xf32>
    %c0_7 = arith.constant 0 : index
    %c0_8 = arith.constant 0 : index
    %19 = vector.load %arg2[%c0_7, %c0_8] : memref<128x1xf32, #tpu.memory_space<vmem>>, vector<128x1xf32>
    %20 = vector.broadcast %19 : vector<128x1xf32> to vector<128x25xf32>
    %21 = arith.addf %18, %20 : vector<128x25xf32>
    %c0_9 = arith.constant 0 : index
    %c0_10 = arith.constant 0 : index
    %22 = vector.load %arg3[%c0_9, %c0_10] : memref<128x25xf32, #tpu.memory_space<vmem>>, vector<128x25xf32>
    tpu.vector_store %arg3[%c0_9, %c0_10], %21 {strides = array<i32>} : memref<128x25xf32, #tpu.memory_space<vmem>>, vector<128x25xf32>,
    return
  }
}

</mosaic_0001>

<llo_original>
// kernel: normalize_basis_pallas.1
$region0: #{normalize_basis_pallas.1}
  #allocation0 [shape = 'u32[]', space=smem, size = 0x4, offset = 0x4, fixed_abs, tag = 'smem constant byte address 0x4 - core index']
  #allocation1 [shape = 'u32[144,128]{1,0:T(1,128)}', space=vmem, size = 0x12000, scoped, tag = 'internal scratch']
  %s0 = inlined_call_operand.vmem [shape: f32[128,25], index: 0, kind: input, shape index: {}]
  %s1 = inlined_call_operand.vmem [shape: f32[128,1], index: 1, kind: input, shape index: {}]
  %s2 = inlined_call_operand.vmem [shape: f32[128,1], index: 2, kind: input, shape index: {}]
  %s3 = inlined_call_operand.vmem [shape: f32[128,25], index: 3, kind: output, shape index: {}]
  %s4 = sld [smem:[#allocation0]]
  $region22: #{normalize_basis_pallas.1} parent=0
    _
  %s6 = ssub.s32 1, %s4
  %s7 = scalar_select 0, %s6, %s4
  // Predicated region
  $region2: #{normalize_basis_pallas.1} parent=0 // pred_check
    _
  $region3: #{normalize_basis_pallas.1} parent=0 // pred_check_branch
    %9 = sbr.rel (0) target = $region5
  $region4: #{normalize_basis_pallas.1} parent=0 // pred_region
    _
  $region5: #{normalize_basis_pallas.1} parent=0 // pred_fallthru
    _
  // Predicated region
  $region6: #{normalize_basis_pallas.1} parent=0 // pred_check
    _
  $region7: #{normalize_basis_pallas.1} parent=0 // pred_check_branch
    %11 = sbr.rel (0) target = $region9
  $region8: #{normalize_basis_pallas.1} parent=0 // pred_region
    _
  $region9: #{normalize_basis_pallas.1} parent=0 // pred_fallthru
    _
  // Predicated region
  $region10: #{normalize_basis_pallas.1} parent=0 // pred_check
    _
  $region11: #{normalize_basis_pallas.1} parent=0 // pred_check_branch
    %13 = sbr.rel (0) target = $region13
  $region12: #{normalize_basis_pallas.1} parent=0 // pred_region
    _
  $region13: #{normalize_basis_pallas.1} parent=0 // pred_fallthru
    _
  %v14 = vld [vmem:[%s0] sm:$0xff]
  %v15 = vld [vmem:[%s0 + $0x8] sm:$0xff]
  %v16 = vld [vmem:[%s0 + $0x10] sm:$0xff]
  %v17 = vld [vmem:[%s0 + $0x18] sm:$0xff]
  %v18 = vld [vmem:[%s0 + $0x20] sm:$0xff]
  %v19 = vld [vmem:[%s0 + $0x28] sm:$0xff]
  %v20 = vld [vmem:[%s0 + $0x30] sm:$0xff]
  %v21 = vld [vmem:[%s0 + $0x38] sm:$0xff]
  %v22 = vld [vmem:[%s0 + $0x40] sm:$0xff]
  %v23 = vld [vmem:[%s0 + $0x48] sm:$0xff]
  %v24 = vld [vmem:[%s0 + $0x50] sm:$0xff]
  %v25 = vld [vmem:[%s0 + $0x58] sm:$0xff]
  %v26 = vld [vmem:[%s0 + $0x60] sm:$0xff]
  %v27 = vld [vmem:[%s0 + $0x68] sm:$0xff]
  %v28 = vld [vmem:[%s0 + $0x70] sm:$0xff]
  %v29 = vld [vmem:[%s0 + $0x78] sm:$0xff]
  %vm30 = vcmask 203776
  %v31 = vsel %vm30, %v14, 0.0
  %32 = vadd.xlane.f32.xlu0 %v31
  %v33 = vpop.xlane.xlu0 %32
  %v34 = vsel %vm30, %v15, 0.0
  %35 = vadd.xlane.f32.xlu0 %v34
  %v36 = vpop.xlane.xlu0 %35
  %v37 = vsel %vm30, %v16, 0.0
  %38 = vadd.xlane.f32.xlu0 %v37
  %v39 = vpop.xlane.xlu0 %38
  %v40 = vsel %vm30, %v17, 0.0
  %41 = vadd.xlane.f32.xlu0 %v40
  %v42 = vpop.xlane.xlu0 %41
  %v43 = vsel %vm30, %v18, 0.0
  %44 = vadd.xlane.f32.xlu0 %v43
  %v45 = vpop.xlane.xlu0 %44
  %v46 = vsel %vm30, %v19, 0.0
  %47 = vadd.xlane.f32.xlu0 %v46
  %v48 = vpop.xlane.xlu0 %47
  %v49 = vsel %vm30, %v20, 0.0
  %50 = vadd.xlane.f32.xlu0 %v49
  %v51 = vpop.xlane.xlu0 %50
  %v52 = vsel %vm30, %v21, 0.0
  %53 = vadd.xlane.f32.xlu0 %v52
  %v54 = vpop.xlane.xlu0 %53
  %v55 = vsel %vm30, %v22, 0.0
  %56 = vadd.xlane.f32.xlu0 %v55
  %v57 = vpop.xlane.xlu0 %56
  %v58 = vsel %vm30, %v23, 0.0
  %59 = vadd.xlane.f32.xlu0 %v58
  %v60 = vpop.xlane.xlu0 %59
  %v61 = vsel %vm30, %v24, 0.0
  %62 = vadd.xlane.f32.xlu0 %v61
  %v63 = vpop.xlane.xlu0 %62
  %v64 = vsel %vm30, %v25, 0.0
  %65 = vadd.xlane.f32.xlu0 %v64
  %v66 = vpop.xlane.xlu0 %65
  %v67 = vsel %vm30, %v26, 0.0
  %68 = vadd.xlane.f32.xlu0 %v67
  %v69 = vpop.xlane.xlu0 %68
  %v70 = vsel %vm30, %v27, 0.0
  %71 = vadd.xlane.f32.xlu0 %v70
  %v72 = vpop.xlane.xlu0 %71
  %v73 = vsel %vm30, %v28, 0.0
  %74 = vadd.xlane.f32.xlu0 %v73
  %v75 = vpop.xlane.xlu0 %74
  %v76 = vsel %vm30, %v29, 0.0
  %77 = vadd.xlane.f32.xlu0 %v76
  %v78 = vpop.xlane.xlu0 %77
  %v79 = vmul.f32 %v33, 0.04
  %v80 = vmul.f32 %v36, 0.04
  %v81 = vmul.f32 %v39, 0.04
  %v82 = vmul.f32 %v42, 0.04
  %v83 = vmul.f32 %v45, 0.04
  %v84 = vmul.f32 %v48, 0.04
  %v85 = vmul.f32 %v51, 0.04
  %v86 = vmul.f32 %v54, 0.04
  %v87 = vmul.f32 %v57, 0.04
  %v88 = vmul.f32 %v60, 0.04
  %v89 = vmul.f32 %v63, 0.04
  %v90 = vmul.f32 %v66, 0.04
  %v91 = vmul.f32 %v69, 0.04
  %v92 = vmul.f32 %v72, 0.04
  %v93 = vmul.f32 %v75, 0.04
  %v94 = vmul.f32 %v78, 0.04
  %v95 = vsub.f32 %v14, %v79
  %v96 = vsub.f32 %v15, %v80
  %v97 = vsub.f32 %v16, %v81
  %v98 = vsub.f32 %v17, %v82
  %v99 = vsub.f32 %v18, %v83
  %v100 = vsub.f32 %v19, %v84
  %v101 = vsub.f32 %v20, %v85
  %v102 = vsub.f32 %v21, %v86
  %v103 = vsub.f32 %v22, %v87
  %v104 = vsub.f32 %v23, %v88
  %v105 = vsub.f32 %v24, %v89
  %v106 = vsub.f32 %v25, %v90
  %v107 = vsub.f32 %v26, %v91
  %v108 = vsub.f32 %v27, %v92
  %v109 = vsub.f32 %v28, %v93
  %v110 = vsub.f32 %v29, %v94
  %v111 = vmul.f32 %v95, %v95
  %v112 = vmul.f32 %v96, %v96
  %v113 = vmul.f32 %v97, %v97
  %v114 = vmul.f32 %v98, %v98
  %v115 = vmul.f32 %v99, %v99
  %v116 = vmul.f32 %v100, %v100
  %v117 = vmul.f32 %v101, %v101
  %v118 = vmul.f32 %v102, %v102
  %v119 = vmul.f32 %v103, %v103
  %v120 = vmul.f32 %v104, %v104
  %v121 = vmul.f32 %v105, %v105
  %v122 = vmul.f32 %v106, %v106
  %v123 = vmul.f32 %v107, %v107
  %v124 = vmul.f32 %v108, %v108
  %v125 = vmul.f32 %v109, %v109
  %v126 = vmul.f32 %v110, %v110
  %v127 = vsel %vm30, %v111, 0.0
  %128 = vadd.xlane.f32.xlu0 %v127
  %v129 = vpop.xlane.xlu0 %128
  %v130 = vsel %vm30, %v112, 0.0
  %131 = vadd.xlane.f32.xlu0 %v130
  %v132 = vpop.xlane.xlu0 %131
  %v133 = vsel %vm30, %v113, 0.0
  %134 = vadd.xlane.f32.xlu0 %v133
  %v135 = vpop.xlane.xlu0 %134
  %v136 = vsel %vm30, %v114, 0.0
  %137 = vadd.xlane.f32.xlu0 %v136
  %v138 = vpop.xlane.xlu0 %137
  %v139 = vsel %vm30, %v115, 0.0
  %140 = vadd.xlane.f32.xlu0 %v139
  %v141 = vpop.xlane.xlu0 %140
  %v142 = vsel %vm30, %v116, 0.0
  %143 = vadd.xlane.f32.xlu0 %v142
  %v144 = vpop.xlane.xlu0 %143
  %v145 = vsel %vm30, %v117, 0.0
  %146 = vadd.xlane.f32.xlu0 %v145
  %v147 = vpop.xlane.xlu0 %146
  %v148 = vsel %vm30, %v118, 0.0
  %149 = vadd.xlane.f32.xlu0 %v148
  %v150 = vpop.xlane.xlu0 %149
  %v151 = vsel %vm30, %v119, 0.0
  %152 = vadd.xlane.f32.xlu0 %v151
  %v153 = vpop.xlane.xlu0 %152
  %v154 = vsel %vm30, %v120, 0.0
  %155 = vadd.xlane.f32.xlu0 %v154
  %v156 = vpop.xlane.xlu0 %155
  %v157 = vsel %vm30, %v121, 0.0
  %158 = vadd.xlane.f32.xlu0 %v157
  %v159 = vpop.xlane.xlu0 %158
  %v160 = vsel %vm30, %v122, 0.0
  %161 = vadd.xlane.f32.xlu0 %v160
  %v162 = vpop.xlane.xlu0 %161
  %v163 = vsel %vm30, %v123, 0.0
  %164 = vadd.xlane.f32.xlu0 %v163
  %v165 = vpop.xlane.xlu0 %164
  %v166 = vsel %vm30, %v124, 0.0
  %167 = vadd.xlane.f32.xlu0 %v166
  %v168 = vpop.xlane.xlu0 %167
  %v169 = vsel %vm30, %v125, 0.0
  %170 = vadd.xlane.f32.xlu0 %v169
  %v171 = vpop.xlane.xlu0 %170
  %v172 = vsel %vm30, %v126, 0.0
  %173 = vadd.xlane.f32.xlu0 %v172
  %v174 = vpop.xlane.xlu0 %173
  %v175 = vmul.f32 %v129, 0.041666668
  %v176 = vmul.f32 %v132, 0.041666668
  %v177 = vmul.f32 %v135, 0.041666668
  %v178 = vmul.f32 %v138, 0.041666668
  %v179 = vmul.f32 %v141, 0.041666668
  %v180 = vmul.f32 %v144, 0.041666668
  %v181 = vmul.f32 %v147, 0.041666668
  %v182 = vmul.f32 %v150, 0.041666668
  %v183 = vmul.f32 %v153, 0.041666668
  %v184 = vmul.f32 %v156, 0.041666668
  %v185 = vmul.f32 %v159, 0.041666668
  %v186 = vmul.f32 %v162, 0.041666668
  %v187 = vmul.f32 %v165, 0.041666668
  %v188 = vmul.f32 %v168, 0.041666668
  %v189 = vmul.f32 %v171, 0.041666668
  %v190 = vmul.f32 %v174, 0.041666668
  %v191 = vrsqrt.pop %v175
  %v192 = vmul.f32 %v175, %v191
  %vm193 = vcmp.eq.f32.partialorder %v175, inf
  %v194 = vsel %vm193, %v175, %v192
  %vm195 = vcmp.eq.f32.partialorder %v175, 0.0
  %v196 = vand.u32 %v175, 2147483648
  %v197 = vsel %vm195, %v196, %v194
  %v198 = vrsqrt.pop %v176
  %v199 = vmul.f32 %v176, %v198
  %vm200 = vcmp.eq.f32.partialorder %v176, inf
  %v201 = vsel %vm200, %v176, %v199
  %vm202 = vcmp.eq.f32.partialorder %v176, 0.0
  %v203 = vand.u32 %v176, 2147483648
  %v204 = vsel %vm202, %v203, %v201
  %v205 = vrsqrt.pop %v177
  %v206 = vmul.f32 %v177, %v205
  %vm207 = vcmp.eq.f32.partialorder %v177, inf
  %v208 = vsel %vm207, %v177, %v206
  %vm209 = vcmp.eq.f32.partialorder %v177, 0.0
  %v210 = vand.u32 %v177, 2147483648
  %v211 = vsel %vm209, %v210, %v208
  %v212 = vrsqrt.pop %v178
  %v213 = vmul.f32 %v178, %v212
  %vm214 = vcmp.eq.f32.partialorder %v178, inf
  %v215 = vsel %vm214, %v178, %v213
  %vm216 = vcmp.eq.f32.partialorder %v178, 0.0
  %v217 = vand.u32 %v178, 2147483648
  %v218 = vsel %vm216, %v217, %v215
  %v219 = vrsqrt.pop %v179
  %v220 = vmul.f32 %v179, %v219
  %vm221 = vcmp.eq.f32.partialorder %v179, inf
  %v222 = vsel %vm221, %v179, %v220
  %vm223 = vcmp.eq.f32.partialorder %v179, 0.0
  %v224 = vand.u32 %v179, 2147483648
  %v225 = vsel %vm223, %v224, %v222
  %v226 = vrsqrt.pop %v180
  %v227 = vmul.f32 %v180, %v226
  %vm228 = vcmp.eq.f32.partialorder %v180, inf
  %v229 = vsel %vm228, %v180, %v227
  %vm230 = vcmp.eq.f32.partialorder %v180, 0.0
  %v231 = vand.u32 %v180, 2147483648
  %v232 = vsel %vm230, %v231, %v229
  %v233 = vrsqrt.pop %v181
  %v234 = vmul.f32 %v181, %v233
  %vm235 = vcmp.eq.f32.partialorder %v181, inf
  %v236 = vsel %vm235, %v181, %v234
  %vm237 = vcmp.eq.f32.partialorder %v181, 0.0
  %v238 = vand.u32 %v181, 2147483648
  %v239 = vsel %vm237, %v238, %v236
  %v240 = vrsqrt.pop %v182
  %v241 = vmul.f32 %v182, %v240
  %vm242 = vcmp.eq.f32.partialorder %v182, inf
  %v243 = vsel %vm242, %v182, %v241
  %vm244 = vcmp.eq.f32.partialorder %v182, 0.0
  %v245 = vand.u32 %v182, 2147483648
  %v246 = vsel %vm244, %v245, %v243
  %v247 = vrsqrt.pop %v183
  %v248 = vmul.f32 %v183, %v247
  %vm249 = vcmp.eq.f32.partialorder %v183, inf
  %v250 = vsel %vm249, %v183, %v248
  %vm251 = vcmp.eq.f32.partialorder %v183, 0.0
  %v252 = vand.u32 %v183, 2147483648
  %v253 = vsel %vm251, %v252, %v250
  %v254 = vrsqrt.pop %v184
  %v255 = vmul.f32 %v184, %v254
  %vm256 = vcmp.eq.f32.partialorder %v184, inf
  %v257 = vsel %vm256, %v184, %v255
  %vm258 = vcmp.eq.f32.partialorder %v184, 0.0
  %v259 = vand.u32 %v184, 2147483648
  %v260 = vsel %vm258, %v259, %v257
  %v261 = vrsqrt.pop %v185
  %v262 = vmul.f32 %v185, %v261
  %vm263 = vcmp.eq.f32.partialorder %v185, inf
  %v264 = vsel %vm263, %v185, %v262
  %vm265 = vcmp.eq.f32.partialorder %v185, 0.0
  %v266 = vand.u32 %v185, 2147483648
  %v267 = vsel %vm265, %v266, %v264
  %v268 = vrsqrt.pop %v186
  %v269 = vmul.f32 %v186, %v268
  %vm270 = vcmp.eq.f32.partialorder %v186, inf
  %v271 = vsel %vm270, %v186, %v269
  %vm272 = vcmp.eq.f32.partialorder %v186, 0.0
  %v273 = vand.u32 %v186, 2147483648
  %v274 = vsel %vm272, %v273, %v271
  %v275 = vrsqrt.pop %v187
  %v276 = vmul.f32 %v187, %v275
  %vm277 = vcmp.eq.f32.partialorder %v187, inf
  %v278 = vsel %vm277, %v187, %v276
  %vm279 = vcmp.eq.f32.partialorder %v187, 0.0
  %v280 = vand.u32 %v187, 2147483648
  %v281 = vsel %vm279, %v280, %v278
  %v282 = vrsqrt.pop %v188
  %v283 = vmul.f32 %v188, %v282
  %vm284 = vcmp.eq.f32.partialorder %v188, inf
  %v285 = vsel %vm284, %v188, %v283
  %vm286 = vcmp.eq.f32.partialorder %v188, 0.0
  %v287 = vand.u32 %v188, 2147483648
  %v288 = vsel %vm286, %v287, %v285
  %v289 = vrsqrt.pop %v189
  %v290 = vmul.f32 %v189, %v289
  %vm291 = vcmp.eq.f32.partialorder %v189, inf
  %v292 = vsel %vm291, %v189, %v290
  %vm293 = vcmp.eq.f32.partialorder %v189, 0.0
  %v294 = vand.u32 %v189, 2147483648
  %v295 = vsel %vm293, %v294, %v292
  %v296 = vrsqrt.pop %v190
  %v297 = vmul.f32 %v190, %v296
  %vm298 = vcmp.eq.f32.partialorder %v190, inf
  %v299 = vsel %vm298, %v190, %v297
  %vm300 = vcmp.eq.f32.partialorder %v190, 0.0
  %v301 = vand.u32 %v190, 2147483648
  %v302 = vsel %vm300, %v301, %v299
  %v303 = vld [vmem:[%s1] sm:$0xff]
  %v304 = vld [vmem:[%s1 + $0x8] sm:$0xff]
  %v305 = vld [vmem:[%s1 + $0x10] sm:$0xff]
  %v306 = vld [vmem:[%s1 + $0x18] sm:$0xff]
  %v307 = vld [vmem:[%s1 + $0x20] sm:$0xff]
  %v308 = vld [vmem:[%s1 + $0x28] sm:$0xff]
  %v309 = vld [vmem:[%s1 + $0x30] sm:$0xff]
  %v310 = vld [vmem:[%s1 + $0x38] sm:$0xff]
  %v311 = vld [vmem:[%s1 + $0x40] sm:$0xff]
  %v312 = vld [vmem:[%s1 + $0x48] sm:$0xff]
  %v313 = vld [vmem:[%s1 + $0x50] sm:$0xff]
  %v314 = vld [vmem:[%s1 + $0x58] sm:$0xff]
  %v315 = vld [vmem:[%s1 + $0x60] sm:$0xff]
  %v316 = vld [vmem:[%s1 + $0x68] sm:$0xff]
  %v317 = vld [vmem:[%s1 + $0x70] sm:$0xff]
  %v318 = vld [vmem:[%s1 + $0x78] sm:$0xff]
  %v319 = vadd.f32 %v197, 1e-12
  %v320 = vadd.f32 %v204, 1e-12
  %v321 = vadd.f32 %v211, 1e-12
  %v322 = vadd.f32 %v218, 1e-12
  %v323 = vadd.f32 %v225, 1e-12
  %v324 = vadd.f32 %v232, 1e-12
  %v325 = vadd.f32 %v239, 1e-12
  %v326 = vadd.f32 %v246, 1e-12
  %v327 = vadd.f32 %v253, 1e-12
  %v328 = vadd.f32 %v260, 1e-12
  %v329 = vadd.f32 %v267, 1e-12
  %v330 = vadd.f32 %v274, 1e-12
  %v331 = vadd.f32 %v281, 1e-12
  %v332 = vadd.f32 %v288, 1e-12
  %v333 = vadd.f32 %v295, 1e-12
  %v334 = vadd.f32 %v302, 1e-12
  %v335 = vrcp.pop %v319
  %v336 = vmul.f32 %v303, %v335
  %v337 = vrcp.pop %v320
  %v338 = vmul.f32 %v304, %v337
  %v339 = vrcp.pop %v321
  %v340 = vmul.f32 %v305, %v339
  %v341 = vrcp.pop %v322
  %v342 = vmul.f32 %v306, %v341
  %v343 = vrcp.pop %v323
  %v344 = vmul.f32 %v307, %v343
  %v345 = vrcp.pop %v324
  %v346 = vmul.f32 %v308, %v345
  %v347 = vrcp.pop %v325
  %v348 = vmul.f32 %v309, %v347
  %v349 = vrcp.pop %v326
  %v350 = vmul.f32 %v310, %v349
  %v351 = vrcp.pop %v327
  %v352 = vmul.f32 %v311, %v351
  %v353 = vrcp.pop %v328
  %v354 = vmul.f32 %v312, %v353
  %v355 = vrcp.pop %v329
  %v356 = vmul.f32 %v313, %v355
  %v357 = vrcp.pop %v330
  %v358 = vmul.f32 %v314, %v357
  %v359 = vrcp.pop %v331
  %v360 = vmul.f32 %v315, %v359
  %v361 = vrcp.pop %v332
  %v362 = vmul.f32 %v316, %v361
  %v363 = vrcp.pop %v333
  %v364 = vmul.f32 %v317, %v363
  %v365 = vrcp.pop %v334
  %v366 = vmul.f32 %v318, %v365
  %368 = vset.pattern.permute.xlu0 0
  %369 = vperm.xlu0 %368, %v336
  %v370 = vpop.permute.xlu0 %369
  %373 = vset.pattern.permute.xlu0 0
  %374 = vperm.xlu0 %373, %v338
  %v375 = vpop.permute.xlu0 %374
  %378 = vset.pattern.permute.xlu0 0
  %379 = vperm.xlu0 %378, %v340
  %v380 = vpop.permute.xlu0 %379
  %383 = vset.pattern.permute.xlu0 0
  %384 = vperm.xlu0 %383, %v342
  %v385 = vpop.permute.xlu0 %384
  %388 = vset.pattern.permute.xlu0 0
  %389 = vperm.xlu0 %388, %v344
  %v390 = vpop.permute.xlu0 %389
  %393 = vset.pattern.permute.xlu0 0
  %394 = vperm.xlu0 %393, %v346
  %v395 = vpop.permute.xlu0 %394
  %398 = vset.pattern.permute.xlu0 0
  %399 = vperm.xlu0 %398, %v348
  %v400 = vpop.permute.xlu0 %399
  %403 = vset.pattern.permute.xlu0 0
  %404 = vperm.xlu0 %403, %v350
  %v405 = vpop.permute.xlu0 %404
  %408 = vset.pattern.permute.xlu0 0
  %409 = vperm.xlu0 %408, %v352
  %v410 = vpop.permute.xlu0 %409
  %413 = vset.pattern.permute.xlu0 0
  %414 = vperm.xlu0 %413, %v354
  %v415 = vpop.permute.xlu0 %414
  %418 = vset.pattern.permute.xlu0 0
  %419 = vperm.xlu0 %418, %v356
  %v420 = vpop.permute.xlu0 %419
  %423 = vset.pattern.permute.xlu0 0
  %424 = vperm.xlu0 %423, %v358
  %v425 = vpop.permute.xlu0 %424
  %428 = vset.pattern.permute.xlu0 0
  %429 = vperm.xlu0 %428, %v360
  %v430 = vpop.permute.xlu0 %429
  %433 = vset.pattern.permute.xlu0 0
  %434 = vperm.xlu0 %433, %v362
  %v435 = vpop.permute.xlu0 %434
  %438 = vset.pattern.permute.xlu0 0
  %439 = vperm.xlu0 %438, %v364
  %v440 = vpop.permute.xlu0 %439
  %443 = vset.pattern.permute.xlu0 0
  %444 = vperm.xlu0 %443, %v366
  %v445 = vpop.permute.xlu0 %444
  %v447 = vmul.f32 %v95, %v370
  %v448 = vmul.f32 %v96, %v375
  %v449 = vmul.f32 %v97, %v380
  %v450 = vmul.f32 %v98, %v385
  %v451 = vmul.f32 %v99, %v390
  %v452 = vmul.f32 %v100, %v395
  %v453 = vmul.f32 %v101, %v400
  %v454 = vmul.f32 %v102, %v405
  %v455 = vmul.f32 %v103, %v410
  %v456 = vmul.f32 %v104, %v415
  %v457 = vmul.f32 %v105, %v420
  %v458 = vmul.f32 %v106, %v425
  %v459 = vmul.f32 %v107, %v430
  %v460 = vmul.f32 %v108, %v435
  %v461 = vmul.f32 %v109, %v440
  %v462 = vmul.f32 %v110, %v445
  %v463 = vld [vmem:[%s2] sm:$0xff]
  %v464 = vld [vmem:[%s2 + $0x8] sm:$0xff]
  %v465 = vld [vmem:[%s2 + $0x10] sm:$0xff]
  %v466 = vld [vmem:[%s2 + $0x18] sm:$0xff]
  %v467 = vld [vmem:[%s2 + $0x20] sm:$0xff]
  %v468 = vld [vmem:[%s2 + $0x28] sm:$0xff]
  %v469 = vld [vmem:[%s2 + $0x30] sm:$0xff]
  %v470 = vld [vmem:[%s2 + $0x38] sm:$0xff]
  %v471 = vld [vmem:[%s2 + $0x40] sm:$0xff]
  %v472 = vld [vmem:[%s2 + $0x48] sm:$0xff]
  %v473 = vld [vmem:[%s2 + $0x50] sm:$0xff]
  %v474 = vld [vmem:[%s2 + $0x58] sm:$0xff]
  %v475 = vld [vmem:[%s2 + $0x60] sm:$0xff]
  %v476 = vld [vmem:[%s2 + $0x68] sm:$0xff]
  %v477 = vld [vmem:[%s2 + $0x70] sm:$0xff]
  %v478 = vld [vmem:[%s2 + $0x78] sm:$0xff]
  %480 = vset.pattern.permute.xlu0 0
  %481 = vperm.xlu0 %480, %v463
  %v482 = vpop.permute.xlu0 %481
  %485 = vset.pattern.permute.xlu0 0
  %486 = vperm.xlu0 %485, %v464
  %v487 = vpop.permute.xlu0 %486
  %490 = vset.pattern.permute.xlu0 0
  %491 = vperm.xlu0 %490, %v465
  %v492 = vpop.permute.xlu0 %491
  %495 = vset.pattern.permute.xlu0 0
  %496 = vperm.xlu0 %495, %v466
  %v497 = vpop.permute.xlu0 %496
  %500 = vset.pattern.permute.xlu0 0
  %501 = vperm.xlu0 %500, %v467
  %v502 = vpop.permute.xlu0 %501
  %505 = vset.pattern.permute.xlu0 0
  %506 = vperm.xlu0 %505, %v468
  %v507 = vpop.permute.xlu0 %506
  %510 = vset.pattern.permute.xlu0 0
  %511 = vperm.xlu0 %510, %v469
  %v512 = vpop.permute.xlu0 %511
  %515 = vset.pattern.permute.xlu0 0
  %516 = vperm.xlu0 %515, %v470
  %v517 = vpop.permute.xlu0 %516
  %520 = vset.pattern.permute.xlu0 0
  %521 = vperm.xlu0 %520, %v471
  %v522 = vpop.permute.xlu0 %521
  %525 = vset.pattern.permute.xlu0 0
  %526 = vperm.xlu0 %525, %v472
  %v527 = vpop.permute.xlu0 %526
  %530 = vset.pattern.permute.xlu0 0
  %531 = vperm.xlu0 %530, %v473
  %v532 = vpop.permute.xlu0 %531
  %535 = vset.pattern.permute.xlu0 0
  %536 = vperm.xlu0 %535, %v474
  %v537 = vpop.permute.xlu0 %536
  %540 = vset.pattern.permute.xlu0 0
  %541 = vperm.xlu0 %540, %v475
  %v542 = vpop.permute.xlu0 %541
  %545 = vset.pattern.permute.xlu0 0
  %546 = vperm.xlu0 %545, %v476
  %v547 = vpop.permute.xlu0 %546
  %550 = vset.pattern.permute.xlu0 0
  %551 = vperm.xlu0 %550, %v477
  %v552 = vpop.permute.xlu0 %551
  %555 = vset.pattern.permute.xlu0 0
  %556 = vperm.xlu0 %555, %v478
  %v557 = vpop.permute.xlu0 %556
  %v559 = vadd.f32 %v447, %v482
  %v560 = vadd.f32 %v448, %v487
  %v561 = vadd.f32 %v449, %v492
  %v562 = vadd.f32 %v450, %v497
  %v563 = vadd.f32 %v451, %v502
  %v564 = vadd.f32 %v452, %v507
  %v565 = vadd.f32 %v453, %v512
  %v566 = vadd.f32 %v454, %v517
  %v567 = vadd.f32 %v455, %v522
  %v568 = vadd.f32 %v456, %v527
  %v569 = vadd.f32 %v457, %v532
  %v570 = vadd.f32 %v458, %v537
  %v571 = vadd.f32 %v459, %v542
  %v572 = vadd.f32 %v460, %v547
  %v573 = vadd.f32 %v461, %v552
  %v574 = vadd.f32 %v462, %v557
  %575 = vst.msk [vmem:[%s3] sm:$0xff] %vm30, %v559
  %576 = vst.msk [vmem:[%s3 + $0x8] sm:$0xff] %vm30, %v560
  %577 = vst.msk [vmem:[%s3 + $0x10] sm:$0xff] %vm30, %v561
  %578 = vst.msk [vmem:[%s3 + $0x18] sm:$0xff] %vm30, %v562
  %579 = vst.msk [vmem:[%s3 + $0x20] sm:$0xff] %vm30, %v563
  %580 = vst.msk [vmem:[%s3 + $0x28] sm:$0xff] %vm30, %v564
  %581 = vst.msk [vmem:[%s3 + $0x30] sm:$0xff] %vm30, %v565
  %582 = vst.msk [vmem:[%s3 + $0x38] sm:$0xff] %vm30, %v566
  %583 = vst.msk [vmem:[%s3 + $0x40] sm:$0xff] %vm30, %v567
  %584 = vst.msk [vmem:[%s3 + $0x48] sm:$0xff] %vm30, %v568
  %585 = vst.msk [vmem:[%s3 + $0x50] sm:$0xff] %vm30, %v569
  %586 = vst.msk [vmem:[%s3 + $0x58] sm:$0xff] %vm30, %v570
  %587 = vst.msk [vmem:[%s3 + $0x60] sm:$0xff] %vm30, %v571
  %588 = vst.msk [vmem:[%s3 + $0x68] sm:$0xff] %vm30, %v572
  %589 = vst.msk [vmem:[%s3 + $0x70] sm:$0xff] %vm30, %v573
  %590 = vst.msk [vmem:[%s3 + $0x78] sm:$0xff] %vm30, %v574
  // Predicated region
  $region14: #{normalize_basis_pallas.1} parent=0 // pred_check
    _
  $region15: #{normalize_basis_pallas.1} parent=0 // pred_check_branch
    %592 = sbr.rel (0) target = $region17
  $region16: #{normalize_basis_pallas.1} parent=0 // pred_region
    _
  $region17: #{normalize_basis_pallas.1} parent=0 // pred_fallthru
    _
  // Predicated region
  $region18: #{normalize_basis_pallas.1} parent=0 // pred_check
    _
  $region19: #{normalize_basis_pallas.1} parent=0 // pred_check_branch
    %594 = sbr.rel (0) target = $region21
  $region20: #{normalize_basis_pallas.1} parent=0 // pred_region
    _
  $region21: #{normalize_basis_pallas.1} parent=0 // pred_fallthru
    _

</llo_original>
